<compile_context>
chip_gen: v7x
topology: tpu7x:2x2x1
jax: 0.10.0
libtpu: 0.0.40
codegen_flags: <defaults>
</compile_context>

<pallas_src>
import functools

import jax
import jax.numpy as jnp
from jax.experimental import pallas as pl
from jax.experimental.pallas import tpu as pltpu


def _round_up(x, m):
    return (x + m - 1) // m * m


# --------------------------------------------------------------------------- #
# Chip profile: VMEM capacity, usable VMEM cap, batch-tile roofline knee, #TCs #
# --------------------------------------------------------------------------- #
def _chip_profile():
    vmem_cap = None
    try:
        vmem_cap = int(pltpu.get_tpu_info().vmem_capacity_bytes)
    except Exception:        # info query only; fall back to device_kind below
        vmem_cap = None
    kind = ""
    try:
        kind = jax.devices()[0].device_kind.lower()
    except Exception:
        kind = ""
    if "v6" in kind:
        knee, num_tc, default_vmem = 768, 1, 128 << 20   # worst HBM-BW:MXU ratio
    elif "v5" in kind:
        knee, num_tc, default_vmem = 384, 1, 128 << 20
    elif "v7" in kind:
        knee, num_tc, default_vmem = 512, 2, 64 << 20
    else:
        knee, num_tc, default_vmem = 512, 1, 128 << 20
    if vmem_cap is None:
        vmem_cap = default_vmem
    if vmem_cap <= (64 << 20):               # v7x-class: 64 MiB per TensorCore
        num_tc = max(num_tc, 2)
        knee = min(knee, 512)
        limit_cap = vmem_cap - (12 << 20)    # leave compiler-scratch headroom
    else:                                    # v5e / v6e: 128 MiB physical
        limit_cap = min(vmem_cap - (16 << 20), 112 << 20)
    return vmem_cap, limit_cap, knee, num_tc


def _vmem_needed_bytes(batch_tile, in_size, hidden_p, out_p, num_layers,
                       compute_dtype, out_dtype, resident, single_buffer_consts):
    cs = jnp.dtype(compute_dtype).itemsize
    ob = jnp.dtype(out_dtype).itemsize
    in_lane = _round_up(in_size, 128)
    bt = _round_up(batch_tile, 8)
    cb = 1 if single_buffer_consts else 2
    need = 2 * bt * in_lane * cs                           # x tile (2 bufs)
    need += cb * _round_up(in_size, 16) * hidden_p * cs    # W_in
    if resident:
        need += cb * num_layers * hidden_p * hidden_p * cs  # whole W_hid stack
    else:
        need += 2 * hidden_p * hidden_p * cs                # streamed layer, 2 bufs
    need += cb * num_layers * 8 * hidden_p * 4             # b_hid stack (f32)
    need += cb * hidden_p * out_p * cs                      # W_out
    need += cb * 8 * (hidden_p + out_p) * 4                 # b_in / b_out
    need += 2 * bt * out_p * ob                             # output tile (2 bufs)
    need += bt * hidden_p * cs                               # activation scratch
    return need


# --------------------------------------------------------------------------- #
# Kernel: one grid step = (batch tile i, hidden layer l)                       #
# --------------------------------------------------------------------------- #
def mlp_kernel(resident, x_ref, w_in_ref, b_in_ref, w_hid_ref, b_hid_ref,
               w_out_ref, b_out_ref, o_ref, h_ref):
    l = pl.program_id(1)
    last = pl.num_programs(1) - 1

    # ---- input layer (no activation), only at the first layer step ----------
    @pl.when(l == 0)
    def _input_layer():
        h0 = jnp.dot(x_ref[...], w_in_ref[...],
                     preferred_element_type=jnp.float32)
        h_ref[...] = (h0 + b_in_ref[...]).astype(h_ref.dtype)

    # ---- hidden layer l + ReLU (f32 accumulate, compute-dtype carry) --------
    w_l = w_hid_ref[l] if resident else w_hid_ref[0]
    h = jnp.dot(h_ref[...], w_l, preferred_element_type=jnp.float32)
    h_ref[...] = jnp.maximum(h + b_hid_ref[l], 0.0).astype(h_ref.dtype)

    # ---- output layer (no activation), only at the last layer step ----------
    @pl.when(l == last)
    def _output_layer():
        o = jnp.dot(h_ref[...], w_out_ref[...],
                    preferred_element_type=jnp.float32)
        o_ref[...] = (o + b_out_ref[...]).astype(o_ref.dtype)


# --------------------------------------------------------------------------- #
# One-time parameter preparation (pad to lane multiples + cast)                #
# --------------------------------------------------------------------------- #
def prepare_mlp_params(w_in, b_in, w_hid, b_hid, w_out, b_out, *,
                       compute_dtype=jnp.bfloat16):
    """Pad feature dims to multiples of 128 and cast weights once.

    Hoisted out of the per-call path so repeated forward calls do not re-read
    and re-write the whole weight stack in HBM. Biases stay float32.
    """
    in_size, hidden = w_in.shape
    num_layers = w_hid.shape[0]
    out_size = w_out.shape[1]
    hidden_p = _round_up(hidden, 128)
    out_p = _round_up(out_size, 128)
    f32 = jnp.float32

    b_in_f = jnp.reshape(b_in, (hidden,)).astype(f32)
    b_hid_f = jnp.reshape(b_hid, (num_layers, hidden)).astype(f32)
    b_out_f = jnp.reshape(b_out, (out_size,)).astype(f32)

    if hidden_p == hidden and out_p == out_size:
        # Fast path: already lane-aligned, just cast.
        w_in_p = w_in.astype(compute_dtype)
        w_hid_p = w_hid.astype(compute_dtype)
        w_out_p = w_out.astype(compute_dtype)
        b_in_p = b_in_f.reshape(1, hidden_p)
        b_hid_p = b_hid_f.reshape(num_layers, 1, hidden_p)
        b_out_p = b_out_f.reshape(1, out_p)
    else:
        w_in_p = jnp.zeros((in_size, hidden_p), compute_dtype
                           ).at[:, :hidden].set(w_in.astype(compute_dtype))
        w_hid_p = jnp.zeros((num_layers, hidden_p, hidden_p), compute_dtype
                            ).at[:, :hidden, :hidden].set(
                                w_hid.astype(compute_dtype))
        w_out_p = jnp.zeros((hidden_p, out_p), compute_dtype
                            ).at[:hidden, :out_size].set(
                                w_out.astype(compute_dtype))
        b_in_p = jnp.zeros((1, hidden_p), f32).at[0, :hidden].set(b_in_f)
        b_hid_p = jnp.zeros((num_layers, 1, hidden_p), f32
                            ).at[:, 0, :hidden].set(b_hid_f)
        b_out_p = jnp.zeros((1, out_p), f32).at[0, :out_size].set(b_out_f)

    return dict(w_in=w_in_p, b_in=b_in_p, w_hid=w_hid_p, b_hid=b_hid_p,
                w_out=w_out_p, b_out=b_out_p,
                in_size=in_size, hidden=hidden, hidden_p=hidden_p,
                num_layers=num_layers, out_size=out_size, out_p=out_p,
                compute_dtype=jnp.dtype(compute_dtype))


def _is_buffered_rejection(err):
    msg = str(err).lower()
    return ("pipeline_mode" in msg or "pipeline mode" in msg
            or "buffered" in msg or "buffer_count" in msg)


# --------------------------------------------------------------------------- #
# Hot-path apply                                                               #
# --------------------------------------------------------------------------- #
def mlp_autoregr_apply(params, x, *, batch_tile=None, out_dtype=jnp.float32,
                       weights_resident=None):
    p = params
    in_size, hidden_p, out_p = p["in_size"], p["hidden_p"], p["out_p"]
    num_layers, out_size = p["num_layers"], p["out_size"]
    compute_dtype = p["compute_dtype"]
    assert num_layers >= 1, "kernel requires num_layers >= 1"
    B = x.shape[0]
    assert x.shape == (B, in_size)

    _, limit_cap, knee, num_tc = _chip_profile()
    cs = jnp.dtype(compute_dtype).itemsize
    single_buffer_possible = hasattr(pl, "Buffered")
    const_bufs = 1 if single_buffer_possible else 2

    # Keep the whole hidden-weight stack VMEM-resident when it fits in ~1/3 of
    # the usable budget; otherwise stream one (1, H_p, H_p) block per layer.
    if weights_resident is None:
        stack_bytes = const_bufs * num_layers * hidden_p * hidden_p * cs
        weights_resident = stack_bytes <= limit_cap // 3
    resident = bool(weights_resident)

    # Batch tile: resident weights only need enough rows to fill the MXU;
    # streamed weights need batch_tile ~ the compute/HBM knee so each weight
    # fetch is amortized over enough MXU work (intensity = batch_tile FLOPs/B).
    if batch_tile is None:
        target = 256 if resident else knee
        batch_tile = min(target, _round_up(B, 8))
        if num_tc >= 2 and B >= 16:
            # Keep >= 2 batch tiles so the "parallel" axis feeds both TCs (v7x).
            batch_tile = min(batch_tile, _round_up((B + 1) // 2, 8))
    batch_tile = max(8, _round_up(batch_tile, 8))

    def needed(bt, single):
        return _vmem_needed_bytes(bt, in_size, hidden_p, out_p, num_layers,
                                  compute_dtype, out_dtype, resident, single)

    # Shrink the tile if the footprint overflows the usable VMEM budget.
    while batch_tile > 8 and needed(batch_tile, single_buffer_possible) > limit_cap:
        batch_tile = max(8, _round_up(batch_tile // 2, 8))
    # TODO(synk): for very large hidden sizes (H_p >= ~2048 on v7x, ~4096 on
    # v5e/v6e) tile the per-layer matmul over K/N with pltpu.emit_pipeline
    # instead of one (H_p, H_p) jnp.dot per layer.

    B_p = _round_up(B, batch_tile)
    x_p = jnp.zeros((B_p, in_size), compute_dtype).at[:B].set(
        x.astype(compute_dtype))
    grid = (B_p // batch_tile, num_layers)

    def _call(single_buffer_consts):
        vmem_limit = int(min(max(needed(batch_tile, single_buffer_consts) * 3 // 2,
                                 32 << 20), limit_cap))

        def const_spec(shape):
            idx = lambda i, l: (0,) * len(shape)
            if single_buffer_consts:
                # A block whose index never changes needs no double buffer.
                return pl.BlockSpec(shape, idx, pipeline_mode=pl.Buffered(1))
            return pl.BlockSpec(shape, idx)

        if resident:
            w_hid_spec = const_spec((num_layers, hidden_p, hidden_p))
        else:
            # Streamed per-layer block: index changes with l, so the default
            # double buffering overlaps layer l+1's DMA with layer l's matmul.
            w_hid_spec = pl.BlockSpec((1, hidden_p, hidden_p),
                                      lambda i, l: (l, 0, 0))

        in_specs = [
            pl.BlockSpec((batch_tile, in_size), lambda i, l: (i, 0)),
            const_spec((in_size, hidden_p)),
            const_spec((1, hidden_p)),
            w_hid_spec,
            const_spec((num_layers, 1, hidden_p)),   # resident bias stack
            const_spec((hidden_p, out_p)),
            const_spec((1, out_p)),
        ]
        return pl.pallas_call(
            functools.partial(mlp_kernel, resident),
            out_shape=jax.ShapeDtypeStruct((B_p, out_p), out_dtype),
            grid_spec=pltpu.PrefetchScalarGridSpec(
                num_scalar_prefetch=0,
                grid=grid,
                in_specs=in_specs,
                out_specs=pl.BlockSpec((batch_tile, out_p), lambda i, l: (i, 0)),
                scratch_shapes=[pltpu.VMEM((batch_tile, hidden_p), compute_dtype)],
            ),
            compiler_params=pltpu.CompilerParams(
                dimension_semantics=("parallel", "arbitrary"),
                vmem_limit_bytes=vmem_limit,
            ),
        )(x_p, p["w_in"], p["b_in"], p["w_hid"], p["b_hid"],
          p["w_out"], p["b_out"])

    if single_buffer_possible:
        try:
            out_padded = _call(True)
        except Exception as e:  # only swallow a Buffered(1)/pipeline_mode reject
            if not _is_buffered_rejection(e):
                raise
            out_padded = _call(False)
    else:
        out_padded = _call(False)

    return out_padded[:B, :out_size]


def mlp_autoregr_forward(x, w_in, b_in, w_hid, b_hid, w_out, b_out, *,
                         batch_tile=None, compute_dtype=jnp.bfloat16,
                         out_dtype=jnp.float32, weights_resident=None):
    """Convenience wrapper: prepare (pad + cast) params, then run the kernel.

    For repeated calls, call prepare_mlp_params() once and reuse it with
    mlp_autoregr_apply() so the weight padding/casting is amortized.
    """
    params = prepare_mlp_params(w_in, b_in, w_hid, b_hid, w_out, b_out,
                                compute_dtype=compute_dtype)
    return mlp_autoregr_apply(params, x, batch_tile=batch_tile,
                              out_dtype=out_dtype,
                              weights_resident=weights_resident)


def mlp_autoregr_reference(x, w_in, b_in, w_hid, b_hid, w_out, b_out):
    """Pure-JAX f32 reference mirroring the PyTorch forward."""
    h = x @ w_in + b_in.reshape(1, -1)
    for i in range(w_hid.shape[0]):
        h = jax.nn.relu(h @ w_hid[i] + b_hid[i].reshape(1, -1))
    return h @ w_out + b_out.reshape(1, -1)


if __name__ == "__main__":
    # Small shapes consistent with MLP_autoregr(input_size, hidden_size,
    # num_layers, output_size).
    batch = 8
    input_size = 16
    hidden_size = 32
    num_layers = 2
    output_size = 8

    key = jax.random.PRNGKey(0)
    ks = jax.random.split(key, 8)

    x = jax.random.normal(ks[0], (batch, input_size), dtype=jnp.float32)
    w_in = jax.random.normal(ks[1], (input_size, hidden_size), jnp.float32) * 0.1
    b_in = jax.random.normal(ks[2], (hidden_size,), jnp.float32) * 0.1
    w_hid = jax.random.normal(ks[3], (num_layers, hidden_size, hidden_size),
                              jnp.float32) * 0.1
    b_hid = jax.random.normal(ks[4], (num_layers, hidden_size), jnp.float32) * 0.1
    w_out = jax.random.normal(ks[5], (hidden_size, output_size), jnp.float32) * 0.1
    b_out = jax.random.normal(ks[6], (output_size,), jnp.float32) * 0.1

    ref = mlp_autoregr_reference(x, w_in, b_in, w_hid, b_hid, w_out, b_out)

    # f32-operand path (resident weights auto-selected): tight check.
    params_f32 = prepare_mlp_params(w_in, b_in, w_hid, b_hid, w_out, b_out,
                                    compute_dtype=jnp.float32)
    out_f32 = jax.block_until_ready(mlp_autoregr_apply(params_f32, x))
    assert out_f32.shape == (batch, output_size)
    assert jnp.allclose(out_f32, ref, atol=5e-3, rtol=5e-3), "f32 mismatch vs reference"

    # Default bf16-operand / f32-accumulate path (MXU-peak), prepared once.
    params_bf16 = prepare_mlp_params(w_in, b_in, w_hid, b_hid, w_out, b_out,
                                     compute_dtype=jnp.bfloat16)
    out_bf16 = jax.block_until_ready(mlp_autoregr_apply(params_bf16, x))
    assert out_bf16.shape == (batch, output_size)
    assert jnp.allclose(out_bf16, ref, atol=3e-2, rtol=3e-2), "bf16 mismatch vs reference"

    # Streamed-weight path (forced) to exercise the per-layer DMA pipeline.
    out_streamed = jax.block_until_ready(
        mlp_autoregr_apply(params_bf16, x, weights_resident=False))
    assert jnp.allclose(out_streamed, ref, atol=3e-2, rtol=3e-2), "streamed mismatch"

    print("KERNEL_OK")
</pallas_src>

<mosaic_0001>
module attributes {stable_mosaic.version = 11 : i64} {
  func.func @mlp_kernel(%arg0: i32, %arg1: i32, %arg2: memref<8x16xf32, #tpu.memory_space<vmem>>, %arg3: memref<16x128xf32, #tpu.memory_space<vmem>>, %arg4: memref<1x128xf32, #tpu.memory_space<vmem>>, %arg5: memref<2x128x128xf32, #tpu.memory_space<vmem>>, %arg6: memref<2x1x128xf32, #tpu.memory_space<vmem>>, %arg7: memref<128x128xf32, #tpu.memory_space<vmem>>, %arg8: memref<1x128xf32, #tpu.memory_space<vmem>>, %arg9: memref<8x128xf32, #tpu.memory_space<vmem>>, %arg10: memref<8x128xf32, #tpu.memory_space<vmem>>) attributes {dimension_semantics = [#tpu.dimension_semantics<parallel>, #tpu.dimension_semantics<arbitrary>], iteration_bounds = array<i64: 1, 2>, scalar_prefetch = 0 : i64, scratch_operands = 1 : i64, tpu.core_type = #tpu.core_type<tc>, window_params = [{transform_indices = @transform_0, window_bounds = array<i64: 8, 16>}, {pipeline_mode = #tpu.pipeline_mode<synchronous>, transform_indices = @transform_1, window_bounds = array<i64: 16, 128>}, {pipeline_mode = #tpu.pipeline_mode<synchronous>, transform_indices = @transform_2, window_bounds = array<i64: 1, 128>}, {pipeline_mode = #tpu.pipeline_mode<synchronous>, transform_indices = @transform_3, window_bounds = array<i64: 2, 128, 128>}, {pipeline_mode = #tpu.pipeline_mode<synchronous>, transform_indices = @transform_4, window_bounds = array<i64: 2, 1, 128>}, {pipeline_mode = #tpu.pipeline_mode<synchronous>, transform_indices = @transform_5, window_bounds = array<i64: 128, 128>}, {pipeline_mode = #tpu.pipeline_mode<synchronous>, transform_indices = @transform_6, window_bounds = array<i64: 1, 128>}, {transform_indices = @transform_7, window_bounds = array<i64: 8, 128>}]} {
    %c0_i32 = arith.constant 0 : i32
    %0 = arith.cmpi eq, %arg1, %c0_i32 : i32
    %1 = arith.extui %0 : i1 to i32
    %c0_i32_0 = arith.constant 0 : i32
    %2 = arith.cmpi ne, %1, %c0_i32_0 : i32
    scf.if %2 {
      %c0_10 = arith.constant 0 : index
      %c0_11 = arith.constant 0 : index
      %19 = vector.load %arg2[%c0_10, %c0_11] : memref<8x16xf32, #tpu.memory_space<vmem>>, vector<8x16xf32>
      %c0_12 = arith.constant 0 : index
      %c0_13 = arith.constant 0 : index
      %20 = vector.load %arg3[%c0_12, %c0_13] : memref<16x128xf32, #tpu.memory_space<vmem>>, vector<16x128xf32>
      %cst_14 = arith.constant dense<0.000000e+00> : vector<8x128xf32>
      %21 = tpu.matmul %19, %20, %cst_14 {dimension_numbers = #tpu.dot_dimension_numbers<[1], [0], [0], [1], [0, 0, 1, 1], [], []>} : vector<8x16xf32>, vector<16x128xf32>, vector<8x128xf32> -> vector<8x128xf32>
      %c0_15 = arith.constant 0 : index
      %c0_16 = arith.constant 0 : index
      %22 = vector.load %arg4[%c0_15, %c0_16] : memref<1x128xf32, #tpu.memory_space<vmem>>, vector<1x128xf32>
      %23 = vector.broadcast %22 : vector<1x128xf32> to vector<8x128xf32>
      %24 = arith.addf %21, %23 : vector<8x128xf32>
      %c0_17 = arith.constant 0 : index
      %c0_18 = arith.constant 0 : index
      %25 = vector.load %arg10[%c0_17, %c0_18] : memref<8x128xf32, #tpu.memory_space<vmem>>, vector<8x128xf32>
      tpu.vector_store %arg10[%c0_17, %c0_18], %24 {strides = array<i32>} : memref<8x128xf32, #tpu.memory_space<vmem>>, vector<8x128xf32>,
    } else {
    }
    %3 = arith.index_cast %arg1 : i32 to index
    %c0 = arith.constant 0 : index
    %c0_1 = arith.constant 0 : index
    %4 = vector.load %arg5[%3, %c0, %c0_1] : memref<2x128x128xf32, #tpu.memory_space<vmem>>, vector<1x128x128xf32>
    %5 = vector.shape_cast %4 : vector<1x128x128xf32> to vector<128x128xf32>
    %c0_2 = arith.constant 0 : index
    %c0_3 = arith.constant 0 : index
    %6 = vector.load %arg10[%c0_2, %c0_3] : memref<8x128xf32, #tpu.memory_space<vmem>>, vector<8x128xf32>
    %cst = arith.constant dense<0.000000e+00> : vector<8x128xf32>
    %7 = tpu.matmul %6, %5, %cst {dimension_numbers = #tpu.dot_dimension_numbers<[1], [0], [0], [1], [0, 0, 1, 1], [], []>} : vector<8x128xf32>, vector<128x128xf32>, vector<8x128xf32> -> vector<8x128xf32>
    %8 = arith.index_cast %arg1 : i32 to index
    %c0_4 = arith.constant 0 : index
    %c0_5 = arith.constant 0 : index
    %9 = vector.load %arg6[%8, %c0_4, %c0_5] : memref<2x1x128xf32, #tpu.memory_space<vmem>>, vector<1x1x128xf32>
    %10 = vector.shape_cast %9 : vector<1x1x128xf32> to vector<1x128xf32>
    %11 = vector.broadcast %10 : vector<1x128xf32> to vector<8x128xf32>
    %12 = arith.addf %7, %11 : vector<8x128xf32>
    %cst_6 = arith.constant 0.000000e+00 : f32
    %13 = vector.broadcast %cst_6 : f32 to vector<8x128xf32>
    %14 = arith.maximumf %12, %13 : vector<8x128xf32>
    %c0_7 = arith.constant 0 : index
    %c0_8 = arith.constant 0 : index
    %15 = vector.load %arg10[%c0_7, %c0_8] : memref<8x128xf32, #tpu.memory_space<vmem>>, vector<8x128xf32>
    tpu.vector_store %arg10[%c0_7, %c0_8], %14 {strides = array<i32>} : memref<8x128xf32, #tpu.memory_space<vmem>>, vector<8x128xf32>,
    %c1_i32 = arith.constant 1 : i32
    %16 = arith.cmpi eq, %arg1, %c1_i32 : i32
    %17 = arith.extui %16 : i1 to i32
    %c0_i32_9 = arith.constant 0 : i32
    %18 = arith.cmpi ne, %17, %c0_i32_9 : i32
    scf.if %18 {
      %c0_10 = arith.constant 0 : index
      %c0_11 = arith.constant 0 : index
      %19 = vector.load %arg10[%c0_10, %c0_11] : memref<8x128xf32, #tpu.memory_space<vmem>>, vector<8x128xf32>
      %c0_12 = arith.constant 0 : index
      %c0_13 = arith.constant 0 : index
      %20 = vector.load %arg7[%c0_12, %c0_13] : memref<128x128xf32, #tpu.memory_space<vmem>>, vector<128x128xf32>
      %cst_14 = arith.constant dense<0.000000e+00> : vector<8x128xf32>
      %21 = tpu.matmul %19, %20, %cst_14 {dimension_numbers = #tpu.dot_dimension_numbers<[1], [0], [0], [1], [0, 0, 1, 1], [], []>} : vector<8x128xf32>, vector<128x128xf32>, vector<8x128xf32> -> vector<8x128xf32>
      %c0_15 = arith.constant 0 : index
      %c0_16 = arith.constant 0 : index
      %22 = vector.load %arg8[%c0_15, %c0_16] : memref<1x128xf32, #tpu.memory_space<vmem>>, vector<1x128xf32>
      %23 = vector.broadcast %22 : vector<1x128xf32> to vector<8x128xf32>
      %24 = arith.addf %21, %23 : vector<8x128xf32>
      %c0_17 = arith.constant 0 : index
      %c0_18 = arith.constant 0 : index
      %25 = vector.load %arg9[%c0_17, %c0_18] : memref<8x128xf32, #tpu.memory_space<vmem>>, vector<8x128xf32>
      tpu.vector_store %arg9[%c0_17, %c0_18], %24 {strides = array<i32>} : memref<8x128xf32, #tpu.memory_space<vmem>>, vector<8x128xf32>,
    } else {
    }
    return
  }
  func.func @transform_0(%arg0: i32, %arg1: i32) -> (i32, i32) {
    %c0_i32 = arith.constant 0 : i32
    %c0_i32_0 = arith.constant 0 : i32
    return %arg0, %c0_i32 : i32, i32
  }
  func.func @transform_1(%arg0: i32, %arg1: i32) -> (i32, i32) {
    %c0_i32 = arith.constant 0 : i32
    %c0_i32_0 = arith.constant 0 : i32
    %c0_i32_1 = arith.constant 0 : i32
    return %c0_i32, %c0_i32_0 : i32, i32
  }
  func.func @transform_2(%arg0: i32, %arg1: i32) -> (i32, i32) {
    %c0_i32 = arith.constant 0 : i32
    %c0_i32_0 = arith.constant 0 : i32
    %c0_i32_1 = arith.constant 0 : i32
    return %c0_i32, %c0_i32_0 : i32, i32
  }
  func.func @transform_3(%arg0: i32, %arg1: i32) -> (i32, i32, i32) {
    %c0_i32 = arith.constant 0 : i32
    %c0_i32_0 = arith.constant 0 : i32
    %c0_i32_1 = arith.constant 0 : i32
    %c0_i32_2 = arith.constant 0 : i32
    return %c0_i32, %c0_i32_0, %c0_i32_1 : i32, i32, i32
  }
  func.func @transform_4(%arg0: i32, %arg1: i32) -> (i32, i32, i32) {
    %c0_i32 = arith.constant 0 : i32
    %c0_i32_0 = arith.constant 0 : i32
    %c0_i32_1 = arith.constant 0 : i32
    %c0_i32_2 = arith.constant 0 : i32
    return %c0_i32, %c0_i32_0, %c0_i32_1 : i32, i32, i32
  }
  func.func @transform_5(%arg0: i32, %arg1: i32) -> (i32, i32) {
    %c0_i32 = arith.constant 0 : i32
    %c0_i32_0 = arith.constant 0 : i32
    %c0_i32_1 = arith.constant 0 : i32
    return %c0_i32, %c0_i32_0 : i32, i32
  }
  func.func @transform_6(%arg0: i32, %arg1: i32) -> (i32, i32) {
    %c0_i32 = arith.constant 0 : i32
    %c0_i32_0 = arith.constant 0 : i32
    %c0_i32_1 = arith.constant 0 : i32
    return %c0_i32, %c0_i32_0 : i32, i32
  }
  func.func @transform_7(%arg0: i32, %arg1: i32) -> (i32, i32) {
    %c0_i32 = arith.constant 0 : i32
    %c0_i32_0 = arith.constant 0 : i32
    return %arg0, %c0_i32 : i32, i32
  }
}

</mosaic_0001>

<llo_original>
// kernel: tpu_custom_call.1
$region0: #{tpu_custom_call.1}
  #allocation0 [shape = 'u32[]', space=smem, size = 0x4, offset = 0x4, fixed_abs, tag = 'smem constant byte address 0x4 - core index']
  #allocation1 [shape = 'u32[144,128]{1,0:T(1,128)}', space=vmem, size = 0x12000, scoped, tag = 'internal scratch']
  #allocation2 [shape = 'f32[8,128]{1,0:T(8,128)}', space=vmem, size = 0x1000, scoped, tag = 'scratch operand']
  %s0 = inlined_call_operand.hbm [shape: f32[8,16], index: 0, kind: input, shape index: {}]
  %s1 = inlined_call_operand.hbm [shape: f32[16,128], index: 1, kind: input, shape index: {}]
  %s2 = inlined_call_operand.vmem [shape: f32[1,128], index: 2, kind: input, shape index: {}]
  %s3 = inlined_call_operand.hbm [shape: f32[2,128,128], index: 3, kind: input, shape index: {}]
  %s4 = inlined_call_operand.vmem [shape: f32[2,1,128], index: 4, kind: input, shape index: {}]
  %s5 = inlined_call_operand.hbm [shape: f32[128,128], index: 5, kind: input, shape index: {}]
  %s6 = inlined_call_operand.vmem [shape: f32[1,128], index: 6, kind: input, shape index: {}]
  %s7 = inlined_call_operand.hbm [shape: f32[8,128], index: 7, kind: output, shape index: {}]
  %s8 = sld [smem:[#allocation0]]
  $region85: #{tpu_custom_call.1} parent=0
    _
  %s10 = ssub.s32 1, %s8
  %s11 = scalar_select 0, %s10, %s8
  $region1: #{tpu_custom_call.1} parent=0
    #allocation3 [shape = 'u8[4096]{0}', space=vmem, size = 0x1000, scoped, tag = 'input window, operand 0, single buffered']
    #allocation4 [shape = 's32[2]{0}', space=sflag, size = 0x8, scoped, tag = 'scoped memory for tpu_custom_call.1']
    #allocation5 [shape = 's32[2]{0}', space=sflag, size = 0x8, scoped, tag = 'scoped memory for tpu_custom_call.1']
    #allocation6 [shape = 'u8[8192]{0}', space=vmem, size = 0x2000, scoped, tag = 'input window, operand 1, single buffered']
    #allocation7 [shape = 's32[1]{0}', space=sflag, size = 0x4, scoped, tag = 'scoped memory for tpu_custom_call.1']
    #allocation8 [shape = 'u8[131072]{0}', space=vmem, size = 0x20000, scoped, tag = 'input window, operand 3, single buffered']
    #allocation9 [shape = 'u8[65536]{0}', space=vmem, size = 0x10000, scoped, tag = 'input window, operand 5, single buffered']
    #allocation10 [shape = 's32[1]{0}', space=sflag, size = 0x4, scoped, tag = 'scoped memory for tpu_custom_call.1']
    #allocation11 [shape = 'u8[4096]{0}', space=vmem, size = 0x1000, scoped, tag = 'output window, operand 0, single buffered']
    %12 = vsyncpa [#allocation4], 0
    %13 = vsyncpa [#allocation7], 0
    %14 = vsyncpa [#allocation10], 0
    %15 = vsyncpa [#allocation5], 0
    loop: start=0, step=1, limit=4
    $region2: #{tpu_custom_call.1} parent=1 // loop_pre_header
      _
    $region3: #{tpu_custom_call.1} parent=1 // loop_header
      %s17 = sphi 0, %s21
      %p18 = scmp.ge.s32.totalorder %s17, 4
      %s24 = sphi 0, %s36
      %s25 = sphi 0, %s32
      %s26 = sphi 0, %s24
      %s27 = sphi 0, %s25
      %s28 = sphi 0, %s26
      %s29 = sphi 0, %s27
      %s39 = sphi 0, %s41
      %s42 = sphi 0, %s39
      %s43 = sphi 0, %s42
      %s59 = sphi 0, %s43
      %s63 = sphi 0, %s63
      %s65 = sphi 0, %s63
      %s66 = sphi 0, %s65
      %s80 = sphi 0, %s66
      %s84 = sphi 0, %s84
      %s86 = sphi 0, %s84
      %s87 = sphi 0, %s86
      %s101 = sphi 0, %s87
      %s105 = sphi 0, %s105
      %s107 = sphi 0, %s105
      %s108 = sphi 0, %s107
      %s122 = sphi 0, %s108
      %s126 = sphi 0, %s126
      %s128 = sphi 0, %s126
      %s129 = sphi 0, %s128
      %s143 = sphi 0, %s129
      %s147 = sphi 0, %s147
      %s149 = sphi 0, %s147
      %s150 = sphi 0, %s149
      %s164 = sphi 0, %s150
      %s168 = sphi 0, %s168
      %s170 = sphi 0, %s168
      %s171 = sphi 0, %s170
      %s185 = sphi 0, %s171
      %s191 = sphi 0, %s193
      %s194 = sphi 0, %s191
      %s195 = sphi 0, %s194
      %s211 = sphi 0, %s195
    $region4: #{tpu_custom_call.1} parent=1 // loop_header_branch
      %20 = sbr.rel (%p18) target = $region8
    $region5: #{tpu_custom_call.1} parent=1 // loop_body
      %s22 = ssub.s32 %s17, 1
      %s23 = ssub.s32 %s17, 2
      %s30 = sadd.s32 1, %s25
      %p31 = scmp.ge.s32.totalorder %s30, 2
      %s32 = scalar_select %p31, 0, %s30
      %s33 = sadd.s32 1, %s24
      %s34 = scalar_select %p31, %s33, %s24
      %p35 = scmp.ge.s32.totalorder %s34, 1
      %s36 = scalar_select %p35, 0, %s34
      %s37 = ssub.s32 %s24, %s36
      %p38 = scmp.eq.s32.totalorder %s37, 0
      %s40 = sadd.s32 %s39, 1
      %s41 = scalar_select %p38, %s39, %s40
      %p44 = pneg %p38
      %p45 = scmp.eq.s32.totalorder %s17, 1
      %p46 = por %p44, %p45
      %p47 = scmp.ne.s32.totalorder %s39, %s42
      %p48 = scmp.eq.s32.totalorder %s17, 0
      %p49 = por %p47, %p48
      %p50 = scmp.ne.s32.totalorder %s39, %s42
      %p51 = scmp.eq.s32.totalorder %s22, 1
      %p52 = por %p50, %p51
      %p53 = scmp.ne.s32.totalorder %s42, %s43
      %p54 = scmp.eq.s32.totalorder %s22, 0
      %p55 = por %p53, %p54
      %p56 = scmp.ne.s32.totalorder %s42, %s43
      %p57 = scmp.eq.s32.totalorder %s23, 1
      %p58 = por %p56, %p57
      %p60 = scmp.ne.s32.totalorder %s43, %s59
      %p61 = scmp.eq.s32.totalorder %s23, 0
      %p62 = por %p60, %p61
      %s64 = sadd.s32 %s63, 1
      %p67 = scmp.eq.s32.totalorder %s17, 1
      %p68 = scmp.ne.s32.totalorder %s63, %s65
      %p69 = scmp.eq.s32.totalorder %s17, 0
      %p70 = por %p68, %p69
      %p71 = scmp.ne.s32.totalorder %s63, %s65
      %p72 = scmp.eq.s32.totalorder %s22, 1
      %p73 = por %p71, %p72
      %p74 = scmp.ne.s32.totalorder %s65, %s66
      %p75 = scmp.eq.s32.totalorder %s22, 0
      %p76 = por %p74, %p75
      %p77 = scmp.ne.s32.totalorder %s65, %s66
      %p78 = scmp.eq.s32.totalorder %s23, 1
      %p79 = por %p77, %p78
      %p81 = scmp.ne.s32.totalorder %s66, %s80
      %p82 = scmp.eq.s32.totalorder %s23, 0
      %p83 = por %p81, %p82
      %s85 = sadd.s32 %s84, 1
      %p88 = scmp.eq.s32.totalorder %s17, 1
      %p89 = scmp.ne.s32.totalorder %s84, %s86
      %p90 = scmp.eq.s32.totalorder %s17, 0
      %p91 = por %p89, %p90
      %p92 = scmp.ne.s32.totalorder %s84, %s86
      %p93 = scmp.eq.s32.totalorder %s22, 1
      %p94 = por %p92, %p93
      %p95 = scmp.ne.s32.totalorder %s86, %s87
      %p96 = scmp.eq.s32.totalorder %s22, 0
      %p97 = por %p95, %p96
      %p98 = scmp.ne.s32.totalorder %s86, %s87
      %p99 = scmp.eq.s32.totalorder %s23, 1
      %p100 = por %p98, %p99
      %p102 = scmp.ne.s32.totalorder %s87, %s101
      %p103 = scmp.eq.s32.totalorder %s23, 0
      %p104 = por %p102, %p103
      %s106 = sadd.s32 %s105, 1
      %p109 = scmp.eq.s32.totalorder %s17, 1
      %p110 = scmp.ne.s32.totalorder %s105, %s107
      %p111 = scmp.eq.s32.totalorder %s17, 0
      %p112 = por %p110, %p111
      %p113 = scmp.ne.s32.totalorder %s105, %s107
      %p114 = scmp.eq.s32.totalorder %s22, 1
      %p115 = por %p113, %p114
      %p116 = scmp.ne.s32.totalorder %s107, %s108
      %p117 = scmp.eq.s32.totalorder %s22, 0
      %p118 = por %p116, %p117
      %p119 = scmp.ne.s32.totalorder %s107, %s108
      %p120 = scmp.eq.s32.totalorder %s23, 1
      %p121 = por %p119, %p120
      %p123 = scmp.ne.s32.totalorder %s108, %s122
      %p124 = scmp.eq.s32.totalorder %s23, 0
      %p125 = por %p123, %p124
      %s127 = sadd.s32 %s126, 1
      %p130 = scmp.eq.s32.totalorder %s17, 1
      %p131 = scmp.ne.s32.totalorder %s126, %s128
      %p132 = scmp.eq.s32.totalorder %s17, 0
      %p133 = por %p131, %p132
      %p134 = scmp.ne.s32.totalorder %s126, %s128
      %p135 = scmp.eq.s32.totalorder %s22, 1
      %p136 = por %p134, %p135
      %p137 = scmp.ne.s32.totalorder %s128, %s129
      %p138 = scmp.eq.s32.totalorder %s22, 0
      %p139 = por %p137, %p138
      %p140 = scmp.ne.s32.totalorder %s128, %s129
      %p141 = scmp.eq.s32.totalorder %s23, 1
      %p142 = por %p140, %p141
      %p144 = scmp.ne.s32.totalorder %s129, %s143
      %p145 = scmp.eq.s32.totalorder %s23, 0
      %p146 = por %p144, %p145
      %s148 = sadd.s32 %s147, 1
      %p151 = scmp.eq.s32.totalorder %s17, 1
      %p152 = scmp.ne.s32.totalorder %s147, %s149
      %p153 = scmp.eq.s32.totalorder %s17, 0
      %p154 = por %p152, %p153
      %p155 = scmp.ne.s32.totalorder %s147, %s149
      %p156 = scmp.eq.s32.totalorder %s22, 1
      %p157 = por %p155, %p156
      %p158 = scmp.ne.s32.totalorder %s149, %s150
      %p159 = scmp.eq.s32.totalorder %s22, 0
      %p160 = por %p158, %p159
      %p161 = scmp.ne.s32.totalorder %s149, %s150
      %p162 = scmp.eq.s32.totalorder %s23, 1
      %p163 = por %p161, %p162
      %p165 = scmp.ne.s32.totalorder %s150, %s164
      %p166 = scmp.eq.s32.totalorder %s23, 0
      %p167 = por %p165, %p166
      %s169 = sadd.s32 %s168, 1
      %p172 = scmp.eq.s32.totalorder %s17, 1
      %p173 = scmp.ne.s32.totalorder %s168, %s170
      %p174 = scmp.eq.s32.totalorder %s17, 0
      %p175 = por %p173, %p174
      %p176 = scmp.ne.s32.totalorder %s168, %s170
      %p177 = scmp.eq.s32.totalorder %s22, 1
      %p178 = por %p176, %p177
      %p179 = scmp.ne.s32.totalorder %s170, %s171
      %p180 = scmp.eq.s32.totalorder %s22, 0
      %p181 = por %p179, %p180
      %p182 = scmp.ne.s32.totalorder %s170, %s171
      %p183 = scmp.eq.s32.totalorder %s23, 1
      %p184 = por %p182, %p183
      %p186 = scmp.ne.s32.totalorder %s171, %s185
      %p187 = scmp.eq.s32.totalorder %s23, 0
      %p188 = por %p186, %p187
      %s189 = ssub.s32 %s24, %s36
      %p190 = scmp.eq.s32.totalorder %s189, 0
      %s192 = sadd.s32 %s191, 1
      %s193 = scalar_select %p190, %s191, %s192
      %p196 = pneg %p190
      %p197 = scmp.eq.s32.totalorder %s17, 1
      %p198 = por %p196, %p197
      %p199 = scmp.ne.s32.totalorder %s191, %s194
      %p200 = scmp.eq.s32.totalorder %s17, 0
      %p201 = por %p199, %p200
      %p202 = scmp.ne.s32.totalorder %s191, %s194
      %p203 = scmp.eq.s32.totalorder %s22, 1
      %p204 = por %p202, %p203
      %p205 = scmp.ne.s32.totalorder %s194, %s195
      %p206 = scmp.eq.s32.totalorder %s22, 0
      %p207 = por %p205, %p206
      %p208 = scmp.ne.s32.totalorder %s194, %s195
      %p209 = scmp.eq.s32.totalorder %s23, 1
      %p210 = por %p208, %p209
      %p212 = scmp.ne.s32.totalorder %s195, %s211
      %p213 = scmp.eq.s32.totalorder %s23, 0
      %p214 = por %p212, %p213
      %p215 = scmp.le.s32.totalorder 1, %s17
      %p216 = scmp.lt.s32.totalorder %s17, 3
      %p217 = pnand %p215, %p216
      %p218 = pneg %p217
      // Predicated region
      $region9: #{tpu_custom_call.1} parent=5 // pred_check
        _
      $region10: #{tpu_custom_call.1} parent=5 // pred_check_branch
        %220 = sbr.rel (%p217) target = $region12
      $region11: #{tpu_custom_call.1} parent=5 // pred_region
        %s221 = ssub.s32 %s17, 1
        // Predicated region
        $region13: #{tpu_custom_call.1} parent=11 // pred_check
          %p222 = pneg %p55
        $region14: #{tpu_custom_call.1} parent=11 // pred_check_branch
          %224 = sbr.rel (%p222) target = $region16
        $region15: #{tpu_custom_call.1} parent=11 // pred_region
          %s226 = ssub.s32 128, 128
          %227 = vsyncadd [#allocation4], %s226
          %s228 = smul.addr %s26, 128
          %s229 = scalar_lea.hbm %s0, %s228
          %s231 = sshll.u32 [#allocation3], 4
          %s232 = int_to_ptr.vmem [resolvable:$true] %s231
          %234 = dma.hbm_to_vmem [thread:$0]  %s229, 128, %s232, [#allocation4]
        $region16: #{tpu_custom_call.1} parent=11 // pred_fallthru
          _
        // Predicated region
        $region17: #{tpu_custom_call.1} parent=11 // pred_check
          %p235 = pneg %p76
        $region18: #{tpu_custom_call.1} parent=11 // pred_check_branch
          %237 = sbr.rel (%p235) target = $region20
        $region19: #{tpu_custom_call.1} parent=11 // pred_region
          %s239 = ssub.s32 256, 256
          %240 = vsyncadd [#allocation7], %s239
          %s241 = sshll.u32 [#allocation6], 4
          %s242 = int_to_ptr.vmem [resolvable:$true] %s241
          %247 = dma.hbm_to_vmem [thread:$0]  %s1, 256, %s242, [#allocation7], 128, 128, 8
        $region20: #{tpu_custom_call.1} parent=11 // pred_fallthru
          _
        // Predicated region
        $region21: #{tpu_custom_call.1} parent=11 // pred_check
          %p248 = pneg %p97
        $region22: #{tpu_custom_call.1} parent=11 // pred_check_branch
          %250 = sbr.rel (%p248) target = $region24
        $region23: #{tpu_custom_call.1} parent=11 // pred_region
          _
        $region24: #{tpu_custom_call.1} parent=11 // pred_fallthru
          _
        // Predicated region
        $region25: #{tpu_custom_call.1} parent=11 // pred_check
          %p251 = pneg %p118
        $region26: #{tpu_custom_call.1} parent=11 // pred_check_branch
          %253 = sbr.rel (%p251) target = $region28
        $region27: #{tpu_custom_call.1} parent=11 // pred_region
          %s255 = ssub.s32 4096, 4096
          %256 = vsyncadd [#allocation7], %s255
          %s257 = sshll.u32 [#allocation8], 4
          %s258 = int_to_ptr.vmem [resolvable:$true] %s257
          %263 = dma.hbm_to_vmem [thread:$0]  %s3, 4096, %s258, [#allocation7], 128, 128, 8
        $region28: #{tpu_custom_call.1} parent=11 // pred_fallthru
          _
        // Predicated region
        $region29: #{tpu_custom_call.1} parent=11 // pred_check
          %p264 = pneg %p139
        $region30: #{tpu_custom_call.1} parent=11 // pred_check_branch
          %266 = sbr.rel (%p264) target = $region32
        $region31: #{tpu_custom_call.1} parent=11 // pred_region
          _
        $region32: #{tpu_custom_call.1} parent=11 // pred_fallthru
          _
        // Predicated region
        $region33: #{tpu_custom_call.1} parent=11 // pred_check
          %p267 = pneg %p160
        $region34: #{tpu_custom_call.1} parent=11 // pred_check_branch
          %269 = sbr.rel (%p267) target = $region36
        $region35: #{tpu_custom_call.1} parent=11 // pred_region
          %s271 = ssub.s32 2048, 2048
          %272 = vsyncadd [#allocation10], %s271
          %s273 = sshll.u32 [#allocation9], 4
          %s274 = int_to_ptr.vmem [resolvable:$true] %s273
          %279 = dma.hbm_to_vmem [thread:$0]  %s5, 2048, %s274, [#allocation10], 128, 128, 8
        $region36: #{tpu_custom_call.1} parent=11 // pred_fallthru
          _
        // Predicated region
        $region37: #{tpu_custom_call.1} parent=11 // pred_check
          %p280 = pneg %p181
        $region38: #{tpu_custom_call.1} parent=11 // pred_check_branch
          %282 = sbr.rel (%p280) target = $region40
        $region39: #{tpu_custom_call.1} parent=11 // pred_region
          _
        $region40: #{tpu_custom_call.1} parent=11 // pred_fallthru
          _
      $region12: #{tpu_custom_call.1} parent=5 // pred_fallthru
        _
      %p283 = scmp.lt.s32.totalorder %s17, 2
      // Predicated region
      $region41: #{tpu_custom_call.1} parent=5 // pred_check
        %p284 = pneg %p283
      $region42: #{tpu_custom_call.1} parent=5 // pred_check_branch
        %286 = sbr.rel (%p284) target = $region44
      $region43: #{tpu_custom_call.1} parent=5 // pred_region
        _
      $region44: #{tpu_custom_call.1} parent=5 // pred_fallthru
        _
      %p287 = scmp.le.s32.totalorder 1, %s17
      %p288 = scmp.lt.s32.totalorder %s17, 3
      %p289 = pnand %p287, %p288
      %p290 = pneg %p289
      // Predicated region
      $region45: #{tpu_custom_call.1} parent=5 // pred_check
        _
      $region46: #{tpu_custom_call.1} parent=5 // pred_check_branch
        %292 = sbr.rel (%p289) target = $region48
      $region47: #{tpu_custom_call.1} parent=5 // pred_region
        %s293 = ssub.s32 %s17, 1
        // Predicated region
        $region49: #{tpu_custom_call.1} parent=47 // pred_check
          %p294 = pneg %p55
        $region50: #{tpu_custom_call.1} parent=47 // pred_check_branch
          %296 = sbr.rel (%p294) target = $region52
        $region51: #{tpu_custom_call.1} parent=47 // pred_region
          %297 = dma.done [#allocation4], 128
        $region52: #{tpu_custom_call.1} parent=47 // pred_fallthru
          _
        // Predicated region
        $region53: #{tpu_custom_call.1} parent=47 // pred_check
          %p298 = pneg %p76
        $region54: #{tpu_custom_call.1} parent=47 // pred_check_branch
          %300 = sbr.rel (%p298) target = $region56
        $region55: #{tpu_custom_call.1} parent=47 // pred_region
          %301 = dma.done [#allocation7], 256
        $region56: #{tpu_custom_call.1} parent=47 // pred_fallthru
          _
        // Predicated region
        $region57: #{tpu_custom_call.1} parent=47 // pred_check
          %p302 = pneg %p118
        $region58: #{tpu_custom_call.1} parent=47 // pred_check_branch
          %304 = sbr.rel (%p302) target = $region60
        $region59: #{tpu_custom_call.1} parent=47 // pred_region
          %305 = dma.done [#allocation7], 4096
        $region60: #{tpu_custom_call.1} parent=47 // pred_fallthru
          _
        // Predicated region
        $region61: #{tpu_custom_call.1} parent=47 // pred_check
          %p306 = pneg %p160
        $region62: #{tpu_custom_call.1} parent=47 // pred_check_branch
          %308 = sbr.rel (%p306) target = $region64
        $region63: #{tpu_custom_call.1} parent=47 // pred_region
          %309 = dma.done [#allocation10], 2048
        $region64: #{tpu_custom_call.1} parent=47 // pred_fallthru
          _
        %p310 = pneg %p55
        %p311 = pneg %p52
        %p312 = pneg %p76
        %p313 = pneg %p73
        %p314 = pneg %p97
        %p315 = pneg %p94
        %p316 = pneg %p118
        %p317 = pneg %p115
        %p318 = pneg %p139
        %p319 = pneg %p136
        %p320 = pneg %p160
        %p321 = pneg %p157
        %p322 = pneg %p181
        %p323 = pneg %p178
        %p324 = pneg %p207
        %p325 = pneg %p204
        %p326 = scmp.eq.s32.totalorder %s27, 0
        // Predicated region
        $region65: #{tpu_custom_call.1} parent=47 // pred_check
          %p327 = pneg %p326
        $region66: #{tpu_custom_call.1} parent=47 // pred_check_branch
          %329 = sbr.rel (%p327) target = $region68
        $region67: #{tpu_custom_call.1} parent=47 // pred_region
          %v330 = vld [vmem:[#allocation3] sm:$0xff]
          %v331 = vld [vmem:[#allocation6] sm:$0xff]
          %v332 = vld [vmem:[#allocation6 + $0x8] sm:$0xff]
          %v333 = vld [vmem:[%s2] sm:$0x1]
          %v335 = vlaneseq
          %v336 = vshrl.u32 %v335, 7
          %v337 = vsub.s32 0, %v336
          %v338 = vrot.slane %v333, %v337
          %vm340 = vcmask 130048
          %v342 = vsel %vm340, %v330, 0
          %344 = vmatprep.subr.mxu0 0.0
          %345 = vmatpush1.msra.mxu0 %v331
          %346 = vmatprep.subr.mxu0 0.0
          %347 = vmatpush1.msra.mxu0 %v332
          %348 = vmatprep.subr.mxu0 0.0
          %349 = vmatpush1.msra.mxu0 0.0
          %350 = vmatprep.subr.mxu0 0.0
          %351 = vmatpush1.msra.mxu0 0.0
          %352 = vmatprep.subr.mxu0 0.0
          %353 = vmatpush1.msra.mxu0 0.0
          %354 = vmatprep.subr.mxu0 0.0
          %355 = vmatpush1.msra.mxu0 0.0
          %356 = vmatprep.subr.mxu0 0.0
          %357 = vmatpush1.msra.mxu0 0.0
          %358 = vmatprep.subr.mxu0 0.0
          %359 = vmatpush1.msra.mxu0 0.0
          %360 = vmatprep.subr.mxu0 0.0
          %361 = vmatpush1.msra.mxu0 0.0
          %362 = vmatprep.subr.mxu0 0.0
          %363 = vmatpush1.msra.mxu0 0.0
          %364 = vmatprep.subr.mxu0 0.0
          %365 = vmatpush1.msra.mxu0 0.0
          %366 = vmatprep.subr.mxu0 0.0
          %367 = vmatpush1.msra.mxu0 0.0
          %368 = vmatprep.subr.mxu0 0.0
          %369 = vmatpush1.msra.mxu0 0.0
          %370 = vmatprep.subr.mxu0 0.0
          %371 = vmatpush1.msra.mxu0 0.0
          %372 = vmatprep.subr.mxu0 0.0
          %373 = vmatpush1.msra.mxu0 0.0
          %374 = vmatprep.subr.mxu0 0.0
          %375 = vmatpush1.msra.mxu0 0.0
          %376 = vmatprep.subr.mxu0 0.0
          %377 = vmatpush1.msra.mxu0 0.0
          %378 = vmatprep.subr.mxu0 0.0
          %379 = vmatpush1.msra.mxu0 0.0
          %380 = vmatprep.subr.mxu0 0.0
          %381 = vmatpush1.msra.mxu0 0.0
          %382 = vmatprep.subr.mxu0 0.0
          %383 = vmatpush1.msra.mxu0 0.0
          %384 = vmatprep.subr.mxu0 0.0
          %385 = vmatpush1.msra.mxu0 0.0
          %386 = vmatprep.subr.mxu0 0.0
          %387 = vmatpush1.msra.mxu0 0.0
          %388 = vmatprep.subr.mxu0 0.0
          %389 = vmatpush1.msra.mxu0 0.0
          %390 = vmatprep.subr.mxu0 0.0
          %391 = vmatpush1.msra.mxu0 0.0
          %392 = vmatprep.subr.mxu0 0.0
          %393 = vmatpush1.msra.mxu0 0.0
          %394 = vmatprep.subr.mxu0 0.0
          %395 = vmatpush1.msra.mxu0 0.0
          %396 = vmatprep.subr.mxu0 0.0
          %397 = vmatpush1.msra.mxu0 0.0
          %398 = vmatprep.subr.mxu0 0.0
          %399 = vmatpush1.msra.mxu0 0.0
          %400 = vmatprep.subr.mxu0 0.0
          %401 = vmatpush1.msra.mxu0 0.0
          %402 = vmatprep.subr.mxu0 0.0
          %403 = vmatpush1.msra.mxu0 0.0
          %404 = vmatprep.subr.mxu0 0.0
          %405 = vmatpush1.msra.mxu0 0.0
          %406 = vmatprep.subr.mxu0 0.0
          %407 = vmatpush1.msra.mxu0 0.0
          %408 = vmatprep.mubr.f32.mxu0 0.0
          %409 = vmatmul.mubr.f32.gmra.mrb[0].mxu0 %v342
          %v410 = vpop.f32.mrb[0].mxu0
          %v411 = vadd.f32 %v338, %v410
          %v412 = vpop.f32.mrb[0].mxu0
          %413 = vdwg.mxu0
          %414 = vst [vmem:[#allocation2] sm:$0xff] %v411
        $region68: #{tpu_custom_call.1} parent=47 // pred_fallthru
          _
        %s415 = smul.u32 %s27, 128
        %s416 = scalar_lea.vmem [#allocation8], %s415
        %v417 = vld [vmem:[%s416] sm:$0xff]
        %v418 = vld [vmem:[%s416 + $0x8] sm:$0xff]
        %v419 = vld [vmem:[%s416 + $0x10] sm:$0xff]
        %v420 = vld [vmem:[%s416 + $0x18] sm:$0xff]
        %v421 = vld [vmem:[%s416 + $0x20] sm:$0xff]
        %v422 = vld [vmem:[%s416 + $0x28] sm:$0xff]
        %v423 = vld [vmem:[%s416 + $0x30] sm:$0xff]
        %v424 = vld [vmem:[%s416 + $0x38] sm:$0xff]
        %v425 = vld [vmem:[%s416 + $0x40] sm:$0xff]
        %v426 = vld [vmem:[%s416 + $0x48] sm:$0xff]
        %v427 = vld [vmem:[%s416 + $0x50] sm:$0xff]
        %v428 = vld [vmem:[%s416 + $0x58] sm:$0xff]
        %v429 = vld [vmem:[%s416 + $0x60] sm:$0xff]
        %v430 = vld [vmem:[%s416 + $0x68] sm:$0xff]
        %v431 = vld [vmem:[%s416 + $0x70] sm:$0xff]
        %v432 = vld [vmem:[%s416 + $0x78] sm:$0xff]
        %v433 = vld [vmem:[#allocation2] sm:$0xff]
        %s434 = scalar_lea.vmem %s4, %s27
        %v435 = vld [vmem:[%s434] sm:$0x1]
        %v437 = vlaneseq
        %v438 = vshrl.u32 %v437, 7
        %v439 = vsub.s32 0, %v438
        %v440 = vrot.slane %v435, %v439
        %442 = vmatprep.subr.mxu0 0.0
        %443 = vmatpush1.msra.mxu0 %v417
        %444 = vmatprep.subr.mxu0 0.0
        %445 = vmatpush1.msra.mxu0 %v418
        %446 = vmatprep.subr.mxu0 0.0
        %447 = vmatpush1.msra.mxu0 %v419
        %448 = vmatprep.subr.mxu0 0.0
        %449 = vmatpush1.msra.mxu0 %v420
        %450 = vmatprep.subr.mxu0 0.0
        %451 = vmatpush1.msra.mxu0 %v421
        %452 = vmatprep.subr.mxu0 0.0
        %453 = vmatpush1.msra.mxu0 %v422
        %454 = vmatprep.subr.mxu0 0.0
        %455 = vmatpush1.msra.mxu0 %v423
        %456 = vmatprep.subr.mxu0 0.0
        %457 = vmatpush1.msra.mxu0 %v424
        %458 = vmatprep.subr.mxu0 0.0
        %459 = vmatpush1.msra.mxu0 %v425
        %460 = vmatprep.subr.mxu0 0.0
        %461 = vmatpush1.msra.mxu0 %v426
        %462 = vmatprep.subr.mxu0 0.0
        %463 = vmatpush1.msra.mxu0 %v427
        %464 = vmatprep.subr.mxu0 0.0
        %465 = vmatpush1.msra.mxu0 %v428
        %466 = vmatprep.subr.mxu0 0.0
        %467 = vmatpush1.msra.mxu0 %v429
        %468 = vmatprep.subr.mxu0 0.0
        %469 = vmatpush1.msra.mxu0 %v430
        %470 = vmatprep.subr.mxu0 0.0
        %471 = vmatpush1.msra.mxu0 %v431
        %472 = vmatprep.subr.mxu0 0.0
        %473 = vmatpush1.msra.mxu0 %v432
        %474 = vmatprep.subr.mxu0 0.0
        %475 = vmatpush1.msra.mxu0 0.0
        %476 = vmatprep.subr.mxu0 0.0
        %477 = vmatpush1.msra.mxu0 0.0
        %478 = vmatprep.subr.mxu0 0.0
        %479 = vmatpush1.msra.mxu0 0.0
        %480 = vmatprep.subr.mxu0 0.0
        %481 = vmatpush1.msra.mxu0 0.0
        %482 = vmatprep.subr.mxu0 0.0
        %483 = vmatpush1.msra.mxu0 0.0
        %484 = vmatprep.subr.mxu0 0.0
        %485 = vmatpush1.msra.mxu0 0.0
        %486 = vmatprep.subr.mxu0 0.0
        %487 = vmatpush1.msra.mxu0 0.0
        %488 = vmatprep.subr.mxu0 0.0
        %489 = vmatpush1.msra.mxu0 0.0
        %490 = vmatprep.subr.mxu0 0.0
        %491 = vmatpush1.msra.mxu0 0.0
        %492 = vmatprep.subr.mxu0 0.0
        %493 = vmatpush1.msra.mxu0 0.0
        %494 = vmatprep.subr.mxu0 0.0
        %495 = vmatpush1.msra.mxu0 0.0
        %496 = vmatprep.subr.mxu0 0.0
        %497 = vmatpush1.msra.mxu0 0.0
        %498 = vmatprep.subr.mxu0 0.0
        %499 = vmatpush1.msra.mxu0 0.0
        %500 = vmatprep.subr.mxu0 0.0
        %501 = vmatpush1.msra.mxu0 0.0
        %502 = vmatprep.subr.mxu0 0.0
        %503 = vmatpush1.msra.mxu0 0.0
        %504 = vmatprep.subr.mxu0 0.0
        %505 = vmatpush1.msra.mxu0 0.0
        %506 = vmatprep.mubr.f32.mxu0 0.0
        %507 = vmatmul.mubr.f32.gmra.mrb[0].mxu0 %v433
        %v508 = vpop.f32.mrb[0].mxu0
        %v509 = vadd.f32 %v440, %v508
        %v510 = vpop.f32.mrb[0].mxu0
        %511 = vdwg.mxu0
        %v512 = vmax.f32 %v509, 0.0
        %513 = vst [vmem:[#allocation2] sm:$0xff] %v512
        %p514 = scmp.eq.s32.totalorder %s27, 1
        // Predicated region
        $region69: #{tpu_custom_call.1} parent=47 // pred_check
          %p515 = pneg %p514
        $region70: #{tpu_custom_call.1} parent=47 // pred_check_branch
          %517 = sbr.rel (%p515) target = $region72
        $region71: #{tpu_custom_call.1} parent=47 // pred_region
          %v518 = vld [vmem:[#allocation2] sm:$0xff]
          %v519 = vld [vmem:[#allocation9] sm:$0xff]
          %v520 = vld [vmem:[#allocation9 + $0x8] sm:$0xff]
          %v521 = vld [vmem:[#allocation9 + $0x10] sm:$0xff]
          %v522 = vld [vmem:[#allocation9 + $0x18] sm:$0xff]
          %v523 = vld [vmem:[#allocation9 + $0x20] sm:$0xff]
          %v524 = vld [vmem:[#allocation9 + $0x28] sm:$0xff]
          %v525 = vld [vmem:[#allocation9 + $0x30] sm:$0xff]
          %v526 = vld [vmem:[#allocation9 + $0x38] sm:$0xff]
          %v527 = vld [vmem:[#allocation9 + $0x40] sm:$0xff]
          %v528 = vld [vmem:[#allocation9 + $0x48] sm:$0xff]
          %v529 = vld [vmem:[#allocation9 + $0x50] sm:$0xff]
          %v530 = vld [vmem:[#allocation9 + $0x58] sm:$0xff]
          %v531 = vld [vmem:[#allocation9 + $0x60] sm:$0xff]
          %v532 = vld [vmem:[#allocation9 + $0x68] sm:$0xff]
          %v533 = vld [vmem:[#allocation9 + $0x70] sm:$0xff]
          %v534 = vld [vmem:[#allocation9 + $0x78] sm:$0xff]
          %v535 = vld [vmem:[%s6] sm:$0x1]
          %v537 = vlaneseq
          %v538 = vshrl.u32 %v537, 7
          %v539 = vsub.s32 0, %v538
          %v540 = vrot.slane %v535, %v539
          %542 = vmatprep.subr.mxu0 0.0
          %543 = vmatpush1.msra.mxu0 %v519
          %544 = vmatprep.subr.mxu0 0.0
          %545 = vmatpush1.msra.mxu0 %v520
          %546 = vmatprep.subr.mxu0 0.0
          %547 = vmatpush1.msra.mxu0 %v521
          %548 = vmatprep.subr.mxu0 0.0
          %549 = vmatpush1.msra.mxu0 %v522
          %550 = vmatprep.subr.mxu0 0.0
          %551 = vmatpush1.msra.mxu0 %v523
          %552 = vmatprep.subr.mxu0 0.0
          %553 = vmatpush1.msra.mxu0 %v524
          %554 = vmatprep.subr.mxu0 0.0
          %555 = vmatpush1.msra.mxu0 %v525
          %556 = vmatprep.subr.mxu0 0.0
          %557 = vmatpush1.msra.mxu0 %v526
          %558 = vmatprep.subr.mxu0 0.0
          %559 = vmatpush1.msra.mxu0 %v527
          %560 = vmatprep.subr.mxu0 0.0
          %561 = vmatpush1.msra.mxu0 %v528
          %562 = vmatprep.subr.mxu0 0.0
          %563 = vmatpush1.msra.mxu0 %v529
          %564 = vmatprep.subr.mxu0 0.0
          %565 = vmatpush1.msra.mxu0 %v530
          %566 = vmatprep.subr.mxu0 0.0
          %567 = vmatpush1.msra.mxu0 %v531
          %568 = vmatprep.subr.mxu0 0.0
          %569 = vmatpush1.msra.mxu0 %v532
          %570 = vmatprep.subr.mxu0 0.0
          %571 = vmatpush1.msra.mxu0 %v533
          %572 = vmatprep.subr.mxu0 0.0
          %573 = vmatpush1.msra.mxu0 %v534
          %574 = vmatprep.subr.mxu0 0.0
          %575 = vmatpush1.msra.mxu0 0.0
          %576 = vmatprep.subr.mxu0 0.0
          %577 = vmatpush1.msra.mxu0 0.0
          %578 = vmatprep.subr.mxu0 0.0
          %579 = vmatpush1.msra.mxu0 0.0
          %580 = vmatprep.subr.mxu0 0.0
          %581 = vmatpush1.msra.mxu0 0.0
          %582 = vmatprep.subr.mxu0 0.0
          %583 = vmatpush1.msra.mxu0 0.0
          %584 = vmatprep.subr.mxu0 0.0
          %585 = vmatpush1.msra.mxu0 0.0
          %586 = vmatprep.subr.mxu0 0.0
          %587 = vmatpush1.msra.mxu0 0.0
          %588 = vmatprep.subr.mxu0 0.0
          %589 = vmatpush1.msra.mxu0 0.0
          %590 = vmatprep.subr.mxu0 0.0
          %591 = vmatpush1.msra.mxu0 0.0
          %592 = vmatprep.subr.mxu0 0.0
          %593 = vmatpush1.msra.mxu0 0.0
          %594 = vmatprep.subr.mxu0 0.0
          %595 = vmatpush1.msra.mxu0 0.0
          %596 = vmatprep.subr.mxu0 0.0
          %597 = vmatpush1.msra.mxu0 0.0
          %598 = vmatprep.subr.mxu0 0.0
          %599 = vmatpush1.msra.mxu0 0.0
          %600 = vmatprep.subr.mxu0 0.0
          %601 = vmatpush1.msra.mxu0 0.0
          %602 = vmatprep.subr.mxu0 0.0
          %603 = vmatpush1.msra.mxu0 0.0
          %604 = vmatprep.subr.mxu0 0.0
          %605 = vmatpush1.msra.mxu0 0.0
          %606 = vmatprep.mubr.f32.mxu0 0.0
          %607 = vmatmul.mubr.f32.gmra.mrb[0].mxu0 %v518
          %v608 = vpop.f32.mrb[0].mxu0
          %v609 = vadd.f32 %v540, %v608
          %v610 = vpop.f32.mrb[0].mxu0
          %611 = vdwg.mxu0
          %612 = vst [vmem:[#allocation11] sm:$0xff] %v609
        $region72: #{tpu_custom_call.1} parent=47 // pred_fallthru
          _
        // Predicated region
        $region73: #{tpu_custom_call.1} parent=47 // pred_check
          %p613 = pneg %p204
        $region74: #{tpu_custom_call.1} parent=47 // pred_check_branch
          %615 = sbr.rel (%p613) target = $region76
        $region75: #{tpu_custom_call.1} parent=47 // pred_region
          %s617 = ssub.s32 128, 128
          %618 = vsyncadd [#allocation5], %s617
          %s619 = smul.addr %s26, 128
          %s620 = scalar_lea.hbm %s7, %s619
          %s622 = sshll.u32 [#allocation11], 4
          %s623 = int_to_ptr.vmem [resolvable:$true] %s622
          %625 = dma.vmem_to_hbm [thread:$0]  %s623, 128, %s620, [#allocation5]
        $region76: #{tpu_custom_call.1} parent=47 // pred_fallthru
          _
        // Predicated region
        $region77: #{tpu_custom_call.1} parent=47 // pred_check
          %p626 = pneg %p204
        $region78: #{tpu_custom_call.1} parent=47 // pred_check_branch
          %628 = sbr.rel (%p626) target = $region80
        $region79: #{tpu_custom_call.1} parent=47 // pred_region
          %629 = dma.done [#allocation5], 128
        $region80: #{tpu_custom_call.1} parent=47 // pred_fallthru
          _
      $region48: #{tpu_custom_call.1} parent=5 // pred_fallthru
        _
      %p630 = scmp.le.s32.totalorder 2, %s17
      // Predicated region
      $region81: #{tpu_custom_call.1} parent=5 // pred_check
        %p631 = pneg %p630
      $region82: #{tpu_custom_call.1} parent=5 // pred_check_branch
        %633 = sbr.rel (%p631) target = $region84
      $region83: #{tpu_custom_call.1} parent=5 // pred_region
        %s634 = ssub.s32 %s17, 2
      $region84: #{tpu_custom_call.1} parent=5 // pred_fallthru
        _
    $region6: #{tpu_custom_call.1} parent=1 // loop_footer
      %s21 = sadd.s32 1, %s17
    $region7: #{tpu_custom_call.1} parent=1 // loop_footer_branch
      %16 = sbr.rel target = $region3
    $region8: #{tpu_custom_call.1} parent=1 // loop_exit
      _
    %635 = vsyncpa [#allocation4], 1
    %s636 = scalar_lea.sflag [#allocation4], 1
    %637 = vsyncpa %s636, 1
    %638 = vsyncpa [#allocation7], 1
    %639 = vsyncpa [#allocation10], 1
    %640 = vsyncpa [#allocation5], 1
    %s641 = scalar_lea.sflag [#allocation5], 1
    %642 = vsyncpa %s641, 1

</llo_original>
